<compile_context>
chip_gen: v6e
topology: v6e:2x2x1
jax: 0.10.0
libtpu: 0.0.40
codegen_flags: <defaults>
</compile_context>

<pallas_src>
import jax
import jax.numpy as jnp
from jax.experimental import pallas as pl
from jax.experimental.pallas import tpu as pltpu


_LANES = 128        # lane width of a vreg
_BLOCK_ROWS = 8     # sublanes per grid step -> one (8, 128) f32 vreg per block


def _affine_kernel(w_ref, b_ref, x_ref, o_ref):
    # w_ref, b_ref : (1, 1) f32 in SMEM (scalar parameters)
    # x_ref, o_ref : (_BLOCK_ROWS, _LANES) f32 in VMEM (lane-dense batch slab)
    w = w_ref[0, 0]
    b = b_ref[0, 0]
    o_ref[...] = x_ref[...] * w + b


def _round_up(v, m):
    return ((v + m - 1) // m) * m


@jax.jit
def logarithmic_regression_forward(x, weight, bias):
    """Equivalent of LogarithmicRegression.forward (torch.nn.Linear(1, 1)).

    x      : (N, 1) float32
    weight : (1, 1) float32   (torch.nn.Linear convention: (out, in))
    bias   : (1,)   float32
    returns: (N, 1) float32
    """
    n, f = x.shape
    o = weight.shape[0]
    assert f == 1 and o == 1, "LogarithmicRegression is Linear(1, 1)"

    # Lane-dense slab: flatten the batch onto (rows, 128) with rows a multiple
    # of _BLOCK_ROWS so every block is a full, unmasked (8, 128) tile.
    block_elems = _BLOCK_ROWS * _LANES
    n_pad = _round_up(max(n, 1), block_elems)
    rows = n_pad // _LANES

    x_slab = (
        jnp.zeros((n_pad,), jnp.float32)
        .at[:n]
        .set(x.reshape(-1).astype(jnp.float32))
        .reshape(rows, _LANES)
    )

    w_smem = weight.reshape(1, 1).astype(jnp.float32)
    b_smem = bias.reshape(1, 1).astype(jnp.float32)

    grid = (rows // _BLOCK_ROWS,)

    out_slab = pl.pallas_call(
        _affine_kernel,
        out_shape=jax.ShapeDtypeStruct((rows, _LANES), jnp.float32),
        grid_spec=pltpu.PrefetchScalarGridSpec(
            num_scalar_prefetch=0,
            grid=grid,
            in_specs=[
                pl.BlockSpec(memory_space=pltpu.MemorySpace.SMEM),   # w (1,1)
                pl.BlockSpec(memory_space=pltpu.MemorySpace.SMEM),   # b (1,1)
                pl.BlockSpec((_BLOCK_ROWS, _LANES), lambda i: (i, 0)),
            ],
            out_specs=pl.BlockSpec((_BLOCK_ROWS, _LANES), lambda i: (i, 0)),
        ),
        compiler_params=pltpu.CompilerParams(
            dimension_semantics=("parallel",)   # lets v7x split blocks across 2 TCs
        ),
    )(w_smem, b_smem, x_slab)

    return out_slab.reshape(-1)[:n].reshape(n, 1)


if __name__ == "__main__":
    n_input_features = 1
    batch = 8

    key = jax.random.PRNGKey(0)
    kx, kw, kb = jax.random.split(key, 3)

    # Deterministic parameter init mimicking torch.nn.Linear(1, 1):
    # uniform(-1/sqrt(fan_in), 1/sqrt(fan_in)) with fan_in = 1.
    weight = jax.random.uniform(kw, (1, n_input_features), jnp.float32, -1.0, 1.0)
    bias = jax.random.uniform(kb, (1,), jnp.float32, -1.0, 1.0)

    x = jax.random.normal(kx, (batch, n_input_features), jnp.float32)

    out = logarithmic_regression_forward(x, weight, bias)
    out = jax.block_until_ready(out)

    # Reference check in plain JAX.
    ref = x @ weight.T + bias
    assert out.shape == (batch, 1)
    assert jnp.allclose(out, ref, atol=1e-5, rtol=1e-5)

    print("KERNEL_OK")
</pallas_src>

<mosaic_0001>
module attributes {stable_mosaic.version = 11 : i64} {
  func.func @_affine_kernel(%arg0: i32, %arg1: memref<1x1xf32, #tpu.memory_space<smem>>, %arg2: memref<1x1xf32, #tpu.memory_space<smem>>, %arg3: memref<8x128xf32, #tpu.memory_space<vmem>>, %arg4: memref<8x128xf32, #tpu.memory_space<vmem>>) attributes {dimension_semantics = [#tpu.dimension_semantics<parallel>], iteration_bounds = array<i64: 1>, scalar_prefetch = 0 : i64, scratch_operands = 0 : i64, tpu.core_type = #tpu.core_type<tc>, window_params = [{transform_indices = @transform_0, window_bounds = array<i64: 1, 1>}, {transform_indices = @transform_1, window_bounds = array<i64: 1, 1>}, {transform_indices = @transform_2, window_bounds = array<i64: 8, 128>}, {transform_indices = @transform_3, window_bounds = array<i64: 8, 128>}]} {
    %c0 = arith.constant 0 : index
    %c0_0 = arith.constant 0 : index
    %0 = memref.load %arg1[%c0, %c0_0] : memref<1x1xf32, #tpu.memory_space<smem>>
    %c0_1 = arith.constant 0 : index
    %c0_2 = arith.constant 0 : index
    %1 = memref.load %arg2[%c0_1, %c0_2] : memref<1x1xf32, #tpu.memory_space<smem>>
    %c0_3 = arith.constant 0 : index
    %c0_4 = arith.constant 0 : index
    %2 = vector.load %arg3[%c0_3, %c0_4] : memref<8x128xf32, #tpu.memory_space<vmem>>, vector<8x128xf32>
    %3 = vector.broadcast %0 : f32 to vector<8x128xf32>
    %4 = arith.mulf %2, %3 : vector<8x128xf32>
    %5 = vector.broadcast %1 : f32 to vector<8x128xf32>
    %6 = arith.addf %4, %5 : vector<8x128xf32>
    %c0_5 = arith.constant 0 : index
    %c0_6 = arith.constant 0 : index
    %7 = vector.load %arg4[%c0_5, %c0_6] : memref<8x128xf32, #tpu.memory_space<vmem>>, vector<8x128xf32>
    tpu.vector_store %arg4[%c0_5, %c0_6], %6 {strides = array<i32>} : memref<8x128xf32, #tpu.memory_space<vmem>>, vector<8x128xf32>,
    return
  }
  func.func @transform_0(%arg0: i32) -> (i32, i32) {
    %c0_i32 = arith.constant 0 : i32
    %c0_i32_0 = arith.constant 0 : i32
    %c0_i32_1 = arith.constant 0 : i32
    return %c0_i32, %c0_i32_0 : i32, i32
  }
  func.func @transform_1(%arg0: i32) -> (i32, i32) {
    %c0_i32 = arith.constant 0 : i32
    %c0_i32_0 = arith.constant 0 : i32
    %c0_i32_1 = arith.constant 0 : i32
    return %c0_i32, %c0_i32_0 : i32, i32
  }
  func.func @transform_2(%arg0: i32) -> (i32, i32) {
    %c0_i32 = arith.constant 0 : i32
    %c0_i32_0 = arith.constant 0 : i32
    return %arg0, %c0_i32 : i32, i32
  }
  func.func @transform_3(%arg0: i32) -> (i32, i32) {
    %c0_i32 = arith.constant 0 : i32
    %c0_i32_0 = arith.constant 0 : i32
    return %arg0, %c0_i32 : i32, i32
  }
}

</mosaic_0001>

<llo_original>
// kernel: logarithmic_regression_forward.1
$region0: #{logarithmic_regression_forward.1}
  #allocation0 [shape = 'u32[]', space=smem, size = 0x4, offset = 0x4, fixed_abs, tag = 'smem constant byte address 0x4 - core index']
  #allocation1 [shape = 'u32[144,128]{1,0:T(1,128)}', space=vmem, size = 0x12000, scoped, tag = 'internal scratch']
  #allocation2 [shape = 'f32[1,1]{1,0:T(1,128)S(6)}', space=smem, size = 0x200, scoped, tag = 'scoped memory for logarithmic_regression_forward.1']
  #allocation3 [shape = 'f32[1,1]{1,0:T(1,128)S(6)}', space=smem, size = 0x200, scoped, tag = 'scoped memory for logarithmic_regression_forward.1']
  %s0 = inlined_call_operand.<no memory space> [shape: f32[1,1], index: 0, kind: input, shape index: {}]
  %s1 = inlined_call_operand.<no memory space> [shape: f32[1,1], index: 1, kind: input, shape index: {}]
  %s2 = inlined_call_operand.vmem [shape: f32[8,128], index: 2, kind: input, shape index: {}]
  %s3 = inlined_call_operand.vmem [shape: f32[8,128], index: 3, kind: output, shape index: {}]
  %s4 = sld [smem:[#allocation0]]
  $region22: #{logarithmic_regression_forward.1} parent=0
    _
  %s6 = ssub.s32 1, %s4
  %s7 = scalar_select 0, %s6, %s4
  %8 = sst [smem:[#allocation2]] %s0
  %9 = sst [smem:[#allocation3]] %s1
  // Predicated region
  $region2: #{logarithmic_regression_forward.1} parent=0 // pred_check
    _
  $region3: #{logarithmic_regression_forward.1} parent=0 // pred_check_branch
    %11 = sbr.rel (0) target = $region5
  $region4: #{logarithmic_regression_forward.1} parent=0 // pred_region
    _
  $region5: #{logarithmic_regression_forward.1} parent=0 // pred_fallthru
    _
  // Predicated region
  $region6: #{logarithmic_regression_forward.1} parent=0 // pred_check
    _
  $region7: #{logarithmic_regression_forward.1} parent=0 // pred_check_branch
    %13 = sbr.rel (0) target = $region9
  $region8: #{logarithmic_regression_forward.1} parent=0 // pred_region
    _
  $region9: #{logarithmic_regression_forward.1} parent=0 // pred_fallthru
    _
  // Predicated region
  $region10: #{logarithmic_regression_forward.1} parent=0 // pred_check
    _
  $region11: #{logarithmic_regression_forward.1} parent=0 // pred_check_branch
    %15 = sbr.rel (0) target = $region13
  $region12: #{logarithmic_regression_forward.1} parent=0 // pred_region
    _
  $region13: #{logarithmic_regression_forward.1} parent=0 // pred_fallthru
    _
  %s16 = sld [smem:[#allocation2]]
  %s17 = sld [smem:[#allocation3]]
  %v18 = vld [vmem:[%s2] sm:$0xff]
  %v19 = vstv %s16
  %v20 = vmul.f32 %v18, %v19
  %v21 = vstv %s17
  %v22 = vadd.f32 %v20, %v21
  %23 = vst [vmem:[%s3] sm:$0xff] %v22
  // Predicated region
  $region14: #{logarithmic_regression_forward.1} parent=0 // pred_check
    _
  $region15: #{logarithmic_regression_forward.1} parent=0 // pred_check_branch
    %25 = sbr.rel (0) target = $region17
  $region16: #{logarithmic_regression_forward.1} parent=0 // pred_region
    _
  $region17: #{logarithmic_regression_forward.1} parent=0 // pred_fallthru
    _
  // Predicated region
  $region18: #{logarithmic_regression_forward.1} parent=0 // pred_check
    _
  $region19: #{logarithmic_regression_forward.1} parent=0 // pred_check_branch
    %27 = sbr.rel (0) target = $region21
  $region20: #{logarithmic_regression_forward.1} parent=0 // pred_region
    _
  $region21: #{logarithmic_regression_forward.1} parent=0 // pred_fallthru
    _

</llo_original>
